<compile_context>
chip_gen: v6e
topology: v6e:2x2x1
jax: 0.10.0
libtpu: 0.0.40
codegen_flags: <defaults>
</compile_context>

<pallas_src>
import jax
import jax.numpy as jnp
from jax.experimental import pallas as pl
from jax.experimental.pallas import tpu as pltpu

_TB_ALIGN = 256  # multiple of 128 (lane-dense out block) and 16 (bf16 sublane pairs)


def attention_kernel(x_ref, xq_ref, w1x_ref, w1q_ref, b1_ref, w2_ref, o_ref):
    """One batch tile.

    x_ref, xq_ref : (TB, in_size)   f32 (or bf16) inputs; cast in-kernel
    w1x_ref       : (in_size, 2H)   compute dtype; right half zero
    w1q_ref       : (in_size, 2H)   compute dtype; left half zero
    b1_ref        : (1, 2H)         f32 fused bias
    w2_ref        : (2, 2H)         compute dtype; row0=[w2x|0], row1=[0|w2q]
    o_ref         : (2, TB)         f32 lane-dense output (transposed outside)
    """
    cdt = w1x_ref.dtype
    x = x_ref[...].astype(cdt)
    xq = xq_ref[...].astype(cdt)

    # First layer: two lane-dense MXU dots, summed in the f32 accumulator
    # (avoids the in-VMEM lane concat of the previous version).
    acc = jnp.dot(x, w1x_ref[...], preferred_element_type=jnp.float32)
    acc = acc + jnp.dot(xq, w1q_ref[...], preferred_element_type=jnp.float32)

    # Bias + tanh in the compute dtype (bf16 EUP on v6e/v7x; use f32 on v5e).
    h = jnp.tanh((acc + b1_ref[...]).astype(cdt))                    # (TB, 2H)

    # Second layer: both heads in one small MXU pass -> lane-dense (2, TB).
    o_ref[...] = jax.lax.dot_general(
        w2_ref[...], h,
        dimension_numbers=(((1,), (1,)), ((), ())),
        preferred_element_type=jnp.float32,
    ).astype(o_ref.dtype)


def prepare_attention_weights(params, compute_dtype=jnp.bfloat16):
    """Build the fused, VMEM-resident weight set once per parameter set.

    Use compute_dtype=jnp.float32 on v5e (no bf16 VPU/EUP) or when tighter
    numerical accuracy is required.
    """
    in_size, H = params["w1x"].shape
    H2 = 2 * H
    w1x = jnp.zeros((in_size, H2), jnp.float32).at[:, :H].set(params["w1x"])
    w1q = jnp.zeros((in_size, H2), jnp.float32).at[:, H:].set(params["w1q"])
    b1 = jnp.concatenate([params["b1x"], params["b1q"]], axis=1)      # (1, 2H)
    w2 = jnp.zeros((2, H2), jnp.float32)
    w2 = w2.at[0, :H].set(params["w2x"][:, 0])
    w2 = w2.at[1, H:].set(params["w2q"][:, 0])
    return {
        "w1x": w1x.astype(compute_dtype),
        "w1q": w1q.astype(compute_dtype),
        "b1": b1.astype(jnp.float32),
        "w2": w2.astype(compute_dtype),
    }


def _round_up(v, m):
    return ((v + m - 1) // m) * m


def _pick_tile(B, tile_b):
    tb = min(tile_b, _round_up(B, _TB_ALIGN))
    if B > 2 * _TB_ALIGN:
        # Keep >= 2 grid steps so v7x's 2 TensorCores both get work.
        tb = min(tb, _round_up(pl.cdiv(B, 2), _TB_ALIGN))
    return max(_TB_ALIGN, _round_up(tb, _TB_ALIGN))


def attention_forward(x, xq, weights, *, tile_b=4096):
    """x, xq: (B, in_size) f32 (or bf16).  weights: prepare_attention_weights(...).

    Returns (B, 2) f32: column 0 = project_x(x), column 1 = project_xq(xq)."""
    B, in_size = x.shape
    H2 = weights["w1x"].shape[1]

    tb = _pick_tile(B, tile_b)
    Bp = _round_up(B, tb)
    if Bp != B:
        # TODO(synk): callers with B % tile == 0 avoid this extra padding pass.
        pad = ((0, Bp - B), (0, 0))
        x = jnp.pad(x, pad)
        xq = jnp.pad(xq, pad)

    grid = (Bp // tb,)
    out_t = pl.pallas_call(
        attention_kernel,
        out_shape=jax.ShapeDtypeStruct((2, Bp), jnp.float32),
        grid=grid,
        in_specs=[
            pl.BlockSpec((tb, in_size), lambda i: (i, 0)),   # x tile   (pipelined)
            pl.BlockSpec((tb, in_size), lambda i: (i, 0)),   # xq tile  (pipelined)
            pl.BlockSpec((in_size, H2), lambda i: (0, 0)),   # W1x wide (resident)
            pl.BlockSpec((in_size, H2), lambda i: (0, 0)),   # W1q wide (resident)
            pl.BlockSpec((1, H2), lambda i: (0, 0)),         # fused bias (resident)
            pl.BlockSpec((2, H2), lambda i: (0, 0)),         # fused W2 (resident)
        ],
        out_specs=pl.BlockSpec((2, tb), lambda i: (0, i)),   # lane-dense output
        compiler_params=pltpu.CompilerParams(
            dimension_semantics=("parallel",),               # shard tiles across TCs
            vmem_limit_bytes=32 * 1024 * 1024,
        ),
    )(x, xq, weights["w1x"], weights["w1q"], weights["b1"], weights["w2"])

    # (2, Bp) lane-dense -> (B, 2); matches torch.cat((project_x, project_xq), 1)
    return out_t[:, :B].T


def init_params(key, in_size, hidden_size):
    ks = jax.random.split(key, 6)
    scale1 = 1.0 / jnp.sqrt(in_size)
    scale2 = 1.0 / jnp.sqrt(hidden_size)
    return {
        # stored as (in_size, hidden) == PyTorch weight.T
        "w1x": jax.random.uniform(ks[0], (in_size, hidden_size), jnp.float32, -scale1, scale1),
        "b1x": jax.random.uniform(ks[1], (1, hidden_size), jnp.float32, -scale1, scale1),
        "w2x": jax.random.uniform(ks[2], (hidden_size, 1), jnp.float32, -scale2, scale2),
        "w1q": jax.random.uniform(ks[3], (in_size, hidden_size), jnp.float32, -scale1, scale1),
        "b1q": jax.random.uniform(ks[4], (1, hidden_size), jnp.float32, -scale1, scale1),
        "w2q": jax.random.uniform(ks[5], (hidden_size, 1), jnp.float32, -scale2, scale2),
    }
    # TODO(synk): project_xt params exist in the PyTorch module but are unused in forward.


def attention_ref(x, xq, p):
    sx = jnp.tanh(x @ p["w1x"] + p["b1x"]) @ p["w2x"]
    sq = jnp.tanh(xq @ p["w1q"] + p["b1q"]) @ p["w2q"]
    return jnp.concatenate([sx, sq], axis=1)


if __name__ == "__main__":
    B, in_size, hidden = 8, 32, 64

    key = jax.random.PRNGKey(0)
    kx, kq, kp = jax.random.split(key, 3)
    x = jax.random.normal(kx, (B, in_size), jnp.float32)
    xq = jax.random.normal(kq, (B, in_size), jnp.float32)
    params = init_params(kp, in_size, hidden)

    ref = attention_ref(x, xq, params)

    # Default fast path (v6e/v7x): bf16 MXU operands + bf16 tanh, f32 accumulation.
    w_bf16 = prepare_attention_weights(params, compute_dtype=jnp.bfloat16)
    out = jax.block_until_ready(attention_forward(x, xq, w_bf16))
    assert out.shape == (B, 2), out.shape
    assert jnp.allclose(out, ref, atol=5e-2, rtol=5e-2), "bf16 mismatch vs reference"

    # f32 path (recommended on v5e, which has no bf16 VPU/EUP and is HBM-bound).
    w_f32 = prepare_attention_weights(params, compute_dtype=jnp.float32)
    out32 = jax.block_until_ready(attention_forward(x, xq, w_f32))
    assert out32.shape == (B, 2), out32.shape
    assert jnp.allclose(out32, ref, atol=2e-2, rtol=2e-2), "f32 mismatch vs reference"

    print("KERNEL_OK")
</pallas_src>

<mosaic_0001>
module attributes {stable_mosaic.version = 11 : i64} {
  func.func @attention_kernel(%arg0: i32, %arg1: memref<256x32xf32, #tpu.memory_space<vmem>>, %arg2: memref<256x32xf32, #tpu.memory_space<vmem>>, %arg3: memref<32x128xbf16, #tpu.memory_space<vmem>>, %arg4: memref<32x128xbf16, #tpu.memory_space<vmem>>, %arg5: memref<1x128xf32, #tpu.memory_space<vmem>>, %arg6: memref<2x128xbf16, #tpu.memory_space<vmem>>, %arg7: memref<2x256xf32, #tpu.memory_space<vmem>>) attributes {dimension_semantics = [#tpu.dimension_semantics<parallel>], iteration_bounds = array<i64: 1>, scalar_prefetch = 0 : i64, scratch_operands = 0 : i64, tpu.core_type = #tpu.core_type<tc>, window_params = [{transform_indices = @transform_0, window_bounds = array<i64: 256, 32>}, {transform_indices = @transform_1, window_bounds = array<i64: 256, 32>}, {pipeline_mode = #tpu.pipeline_mode<synchronous>, transform_indices = @transform_2, window_bounds = array<i64: 32, 128>}, {pipeline_mode = #tpu.pipeline_mode<synchronous>, transform_indices = @transform_3, window_bounds = array<i64: 32, 128>}, {pipeline_mode = #tpu.pipeline_mode<synchronous>, transform_indices = @transform_4, window_bounds = array<i64: 1, 128>}, {pipeline_mode = #tpu.pipeline_mode<synchronous>, transform_indices = @transform_5, window_bounds = array<i64: 2, 128>}, {transform_indices = @transform_6, window_bounds = array<i64: 2, 256>}]} {
    %c0 = arith.constant 0 : index
    %c0_0 = arith.constant 0 : index
    %0 = vector.load %arg1[%c0, %c0_0] : memref<256x32xf32, #tpu.memory_space<vmem>>, vector<256x32xf32>
    %1 = arith.truncf %0 : vector<256x32xf32> to vector<256x32xbf16>
    %c0_1 = arith.constant 0 : index
    %c0_2 = arith.constant 0 : index
    %2 = vector.load %arg2[%c0_1, %c0_2] : memref<256x32xf32, #tpu.memory_space<vmem>>, vector<256x32xf32>
    %3 = arith.truncf %2 : vector<256x32xf32> to vector<256x32xbf16>
    %c0_3 = arith.constant 0 : index
    %c0_4 = arith.constant 0 : index
    %4 = vector.load %arg3[%c0_3, %c0_4] : memref<32x128xbf16, #tpu.memory_space<vmem>>, vector<32x128xbf16>
    %cst = arith.constant dense<0.000000e+00> : vector<256x128xf32>
    %5 = tpu.matmul %1, %4, %cst {dimension_numbers = #tpu.dot_dimension_numbers<[1], [0], [0], [1], [0, 0, 1, 1], [], []>} : vector<256x32xbf16>, vector<32x128xbf16>, vector<256x128xf32> -> vector<256x128xf32>
    %c0_5 = arith.constant 0 : index
    %c0_6 = arith.constant 0 : index
    %6 = vector.load %arg4[%c0_5, %c0_6] : memref<32x128xbf16, #tpu.memory_space<vmem>>, vector<32x128xbf16>
    %cst_7 = arith.constant dense<0.000000e+00> : vector<256x128xf32>
    %7 = tpu.matmul %3, %6, %cst_7 {dimension_numbers = #tpu.dot_dimension_numbers<[1], [0], [0], [1], [0, 0, 1, 1], [], []>} : vector<256x32xbf16>, vector<32x128xbf16>, vector<256x128xf32> -> vector<256x128xf32>
    %8 = arith.addf %5, %7 : vector<256x128xf32>
    %c0_8 = arith.constant 0 : index
    %c0_9 = arith.constant 0 : index
    %9 = vector.load %arg5[%c0_8, %c0_9] : memref<1x128xf32, #tpu.memory_space<vmem>>, vector<1x128xf32>
    %10 = vector.broadcast %9 : vector<1x128xf32> to vector<256x128xf32>
    %11 = arith.addf %8, %10 : vector<256x128xf32>
    %12 = arith.truncf %11 : vector<256x128xf32> to vector<256x128xbf16>
    %13 = math.tanh %12 : vector<256x128xbf16>
    %c0_10 = arith.constant 0 : index
    %c0_11 = arith.constant 0 : index
    %14 = vector.load %arg6[%c0_10, %c0_11] : memref<2x128xbf16, #tpu.memory_space<vmem>>, vector<2x128xbf16>
    %cst_12 = arith.constant dense<0.000000e+00> : vector<2x256xf32>
    %15 = tpu.matmul %14, %13, %cst_12 {dimension_numbers = #tpu.dot_dimension_numbers<[1], [1], [0], [0], [0, 0, 1, 0], [], []>} : vector<2x128xbf16>, vector<256x128xbf16>, vector<2x256xf32> -> vector<2x256xf32>
    %c0_13 = arith.constant 0 : index
    %c0_14 = arith.constant 0 : index
    %16 = vector.load %arg7[%c0_13, %c0_14] : memref<2x256xf32, #tpu.memory_space<vmem>>, vector<2x256xf32>
    tpu.vector_store %arg7[%c0_13, %c0_14], %15 {strides = array<i32>} : memref<2x256xf32, #tpu.memory_space<vmem>>, vector<2x256xf32>,
    return
  }
  func.func @transform_0(%arg0: i32) -> (i32, i32) {
    %c0_i32 = arith.constant 0 : i32
    %c0_i32_0 = arith.constant 0 : i32
    return %arg0, %c0_i32 : i32, i32
  }
  func.func @transform_1(%arg0: i32) -> (i32, i32) {
    %c0_i32 = arith.constant 0 : i32
    %c0_i32_0 = arith.constant 0 : i32
    return %arg0, %c0_i32 : i32, i32
  }
  func.func @transform_2(%arg0: i32) -> (i32, i32) {
    %c0_i32 = arith.constant 0 : i32
    %c0_i32_0 = arith.constant 0 : i32
    %c0_i32_1 = arith.constant 0 : i32
    return %c0_i32, %c0_i32_0 : i32, i32
  }
  func.func @transform_3(%arg0: i32) -> (i32, i32) {
    %c0_i32 = arith.constant 0 : i32
    %c0_i32_0 = arith.constant 0 : i32
    %c0_i32_1 = arith.constant 0 : i32
    return %c0_i32, %c0_i32_0 : i32, i32
  }
  func.func @transform_4(%arg0: i32) -> (i32, i32) {
    %c0_i32 = arith.constant 0 : i32
    %c0_i32_0 = arith.constant 0 : i32
    %c0_i32_1 = arith.constant 0 : i32
    return %c0_i32, %c0_i32_0 : i32, i32
  }
  func.func @transform_5(%arg0: i32) -> (i32, i32) {
    %c0_i32 = arith.constant 0 : i32
    %c0_i32_0 = arith.constant 0 : i32
    %c0_i32_1 = arith.constant 0 : i32
    return %c0_i32, %c0_i32_0 : i32, i32
  }
  func.func @transform_6(%arg0: i32) -> (i32, i32) {
    %c0_i32 = arith.constant 0 : i32
    %c0_i32_0 = arith.constant 0 : i32
    return %c0_i32, %arg0 : i32, i32
  }
}

</mosaic_0001>

<llo_original>
// kernel: tpu_custom_call.1
$region0: #{tpu_custom_call.1}
  #allocation0 [shape = 'u32[]', space=smem, size = 0x4, offset = 0x4, fixed_abs, tag = 'smem constant byte address 0x4 - core index']
  #allocation1 [shape = 'u32[144,128]{1,0:T(1,128)}', space=vmem, size = 0x12000, scoped, tag = 'internal scratch']
  %s0 = inlined_call_operand.vmem [shape: f32[256,32], index: 0, kind: input, shape index: {}]
  %s1 = inlined_call_operand.vmem [shape: f32[256,32], index: 1, kind: input, shape index: {}]
  %s2 = inlined_call_operand.vmem [shape: bf16[32,128], index: 2, kind: input, shape index: {}]
  %s3 = inlined_call_operand.vmem [shape: bf16[32,128], index: 3, kind: input, shape index: {}]
  %s4 = inlined_call_operand.vmem [shape: f32[1,128], index: 4, kind: input, shape index: {}]
  %s5 = inlined_call_operand.vmem [shape: bf16[2,128], index: 5, kind: input, shape index: {}]
  %s6 = inlined_call_operand.hbm [shape: f32[2,256], index: 6, kind: output, shape index: {}]
  %s7 = sld [smem:[#allocation0]]
  $region34: #{tpu_custom_call.1} parent=0
    _
  %s9 = ssub.s32 1, %s7
  %s10 = scalar_select 0, %s9, %s7
  $region1: #{tpu_custom_call.1} parent=0
    #allocation2 [shape = 'u8[2048]{0}', space=vmem, size = 0x800, scoped, tag = 'output window, operand 0, single buffered']
    #allocation3 [shape = 's32[1]{0}', space=sflag, size = 0x4, scoped, tag = 'scoped memory for tpu_custom_call.1']
    %11 = vsyncpa [#allocation3], 0
    // Predicated region
    $region2: #{tpu_custom_call.1} parent=1 // pred_check
      _
    $region3: #{tpu_custom_call.1} parent=1 // pred_check_branch
      %13 = sbr.rel (0) target = $region5
    $region4: #{tpu_custom_call.1} parent=1 // pred_region
      _
    $region5: #{tpu_custom_call.1} parent=1 // pred_fallthru
      _
    // Predicated region
    $region6: #{tpu_custom_call.1} parent=1 // pred_check
      _
    $region7: #{tpu_custom_call.1} parent=1 // pred_check_branch
      %15 = sbr.rel (0) target = $region9
    $region8: #{tpu_custom_call.1} parent=1 // pred_region
      _
    $region9: #{tpu_custom_call.1} parent=1 // pred_fallthru
      _
    // Predicated region
    $region10: #{tpu_custom_call.1} parent=1 // pred_check
      _
    $region11: #{tpu_custom_call.1} parent=1 // pred_check_branch
      %17 = sbr.rel (0) target = $region13
    $region12: #{tpu_custom_call.1} parent=1 // pred_region
      _
    $region13: #{tpu_custom_call.1} parent=1 // pred_fallthru
      _
    // Predicated region
    $region14: #{tpu_custom_call.1} parent=1 // pred_check
      _
    $region15: #{tpu_custom_call.1} parent=1 // pred_check_branch
      %19 = sbr.rel (0) target = $region17
    $region16: #{tpu_custom_call.1} parent=1 // pred_region
      _
    $region17: #{tpu_custom_call.1} parent=1 // pred_fallthru
      _
    // Predicated region
    $region18: #{tpu_custom_call.1} parent=1 // pred_check
      _
    $region19: #{tpu_custom_call.1} parent=1 // pred_check_branch
      %21 = sbr.rel (0) target = $region21
    $region20: #{tpu_custom_call.1} parent=1 // pred_region
      _
    $region21: #{tpu_custom_call.1} parent=1 // pred_fallthru
      _
    // Predicated region
    $region22: #{tpu_custom_call.1} parent=1 // pred_check
      _
    $region23: #{tpu_custom_call.1} parent=1 // pred_check_branch
      %23 = sbr.rel (0) target = $region25
    $region24: #{tpu_custom_call.1} parent=1 // pred_region
      _
    $region25: #{tpu_custom_call.1} parent=1 // pred_fallthru
      _
    %v25 = vld [vmem:[%s0] sm:$0xff]
    %v26 = vld [vmem:[%s0 + $0x8] sm:$0xff]
    %v27 = vld [vmem:[%s0 + $0x10] sm:$0xff]
    %v28 = vld [vmem:[%s0 + $0x18] sm:$0xff]
    %v29 = vld [vmem:[%s0 + $0x20] sm:$0xff]
    %v30 = vld [vmem:[%s0 + $0x28] sm:$0xff]
    %v31 = vld [vmem:[%s0 + $0x30] sm:$0xff]
    %v32 = vld [vmem:[%s0 + $0x38] sm:$0xff]
    %v33 = vld [vmem:[%s0 + $0x40] sm:$0xff]
    %v34 = vld [vmem:[%s0 + $0x48] sm:$0xff]
    %v35 = vld [vmem:[%s0 + $0x50] sm:$0xff]
    %v36 = vld [vmem:[%s0 + $0x58] sm:$0xff]
    %v37 = vld [vmem:[%s0 + $0x60] sm:$0xff]
    %v38 = vld [vmem:[%s0 + $0x68] sm:$0xff]
    %v39 = vld [vmem:[%s0 + $0x70] sm:$0xff]
    %v40 = vld [vmem:[%s0 + $0x78] sm:$0xff]
    %v41 = vld [vmem:[%s0 + $0x80] sm:$0xff]
    %v42 = vld [vmem:[%s0 + $0x88] sm:$0xff]
    %v43 = vld [vmem:[%s0 + $0x90] sm:$0xff]
    %v44 = vld [vmem:[%s0 + $0x98] sm:$0xff]
    %v45 = vld [vmem:[%s0 + $0xa0] sm:$0xff]
    %v46 = vld [vmem:[%s0 + $0xa8] sm:$0xff]
    %v47 = vld [vmem:[%s0 + $0xb0] sm:$0xff]
    %v48 = vld [vmem:[%s0 + $0xb8] sm:$0xff]
    %v49 = vld [vmem:[%s0 + $0xc0] sm:$0xff]
    %v50 = vld [vmem:[%s0 + $0xc8] sm:$0xff]
    %v51 = vld [vmem:[%s0 + $0xd0] sm:$0xff]
    %v52 = vld [vmem:[%s0 + $0xd8] sm:$0xff]
    %v53 = vld [vmem:[%s0 + $0xe0] sm:$0xff]
    %v54 = vld [vmem:[%s0 + $0xe8] sm:$0xff]
    %v55 = vld [vmem:[%s0 + $0xf0] sm:$0xff]
    %v56 = vld [vmem:[%s0 + $0xf8] sm:$0xff]
    %v57 = vpack.c.bf16 %v26, %v25
    %v58 = vpack.c.bf16 %v28, %v27
    %v59 = vpack.c.bf16 %v30, %v29
    %v60 = vpack.c.bf16 %v32, %v31
    %v61 = vpack.c.bf16 %v34, %v33
    %v62 = vpack.c.bf16 %v36, %v35
    %v63 = vpack.c.bf16 %v38, %v37
    %v64 = vpack.c.bf16 %v40, %v39
    %v65 = vpack.c.bf16 %v42, %v41
    %v66 = vpack.c.bf16 %v44, %v43
    %v67 = vpack.c.bf16 %v46, %v45
    %v68 = vpack.c.bf16 %v48, %v47
    %v69 = vpack.c.bf16 %v50, %v49
    %v70 = vpack.c.bf16 %v52, %v51
    %v71 = vpack.c.bf16 %v54, %v53
    %v72 = vpack.c.bf16 %v56, %v55
    %v73 = vld [vmem:[%s1] sm:$0xff]
    %v74 = vld [vmem:[%s1 + $0x8] sm:$0xff]
    %v75 = vld [vmem:[%s1 + $0x10] sm:$0xff]
    %v76 = vld [vmem:[%s1 + $0x18] sm:$0xff]
    %v77 = vld [vmem:[%s1 + $0x20] sm:$0xff]
    %v78 = vld [vmem:[%s1 + $0x28] sm:$0xff]
    %v79 = vld [vmem:[%s1 + $0x30] sm:$0xff]
    %v80 = vld [vmem:[%s1 + $0x38] sm:$0xff]
    %v81 = vld [vmem:[%s1 + $0x40] sm:$0xff]
    %v82 = vld [vmem:[%s1 + $0x48] sm:$0xff]
    %v83 = vld [vmem:[%s1 + $0x50] sm:$0xff]
    %v84 = vld [vmem:[%s1 + $0x58] sm:$0xff]
    %v85 = vld [vmem:[%s1 + $0x60] sm:$0xff]
    %v86 = vld [vmem:[%s1 + $0x68] sm:$0xff]
    %v87 = vld [vmem:[%s1 + $0x70] sm:$0xff]
    %v88 = vld [vmem:[%s1 + $0x78] sm:$0xff]
    %v89 = vld [vmem:[%s1 + $0x80] sm:$0xff]
    %v90 = vld [vmem:[%s1 + $0x88] sm:$0xff]
    %v91 = vld [vmem:[%s1 + $0x90] sm:$0xff]
    %v92 = vld [vmem:[%s1 + $0x98] sm:$0xff]
    %v93 = vld [vmem:[%s1 + $0xa0] sm:$0xff]
    %v94 = vld [vmem:[%s1 + $0xa8] sm:$0xff]
    %v95 = vld [vmem:[%s1 + $0xb0] sm:$0xff]
    %v96 = vld [vmem:[%s1 + $0xb8] sm:$0xff]
    %v97 = vld [vmem:[%s1 + $0xc0] sm:$0xff]
    %v98 = vld [vmem:[%s1 + $0xc8] sm:$0xff]
    %v99 = vld [vmem:[%s1 + $0xd0] sm:$0xff]
    %v100 = vld [vmem:[%s1 + $0xd8] sm:$0xff]
    %v101 = vld [vmem:[%s1 + $0xe0] sm:$0xff]
    %v102 = vld [vmem:[%s1 + $0xe8] sm:$0xff]
    %v103 = vld [vmem:[%s1 + $0xf0] sm:$0xff]
    %v104 = vld [vmem:[%s1 + $0xf8] sm:$0xff]
    %v105 = vpack.c.bf16 %v74, %v73
    %v106 = vpack.c.bf16 %v76, %v75
    %v107 = vpack.c.bf16 %v78, %v77
    %v108 = vpack.c.bf16 %v80, %v79
    %v109 = vpack.c.bf16 %v82, %v81
    %v110 = vpack.c.bf16 %v84, %v83
    %v111 = vpack.c.bf16 %v86, %v85
    %v112 = vpack.c.bf16 %v88, %v87
    %v113 = vpack.c.bf16 %v90, %v89
    %v114 = vpack.c.bf16 %v92, %v91
    %v115 = vpack.c.bf16 %v94, %v93
    %v116 = vpack.c.bf16 %v96, %v95
    %v117 = vpack.c.bf16 %v98, %v97
    %v118 = vpack.c.bf16 %v100, %v99
    %v119 = vpack.c.bf16 %v102, %v101
    %v120 = vpack.c.bf16 %v104, %v103
    %v121 = vld [vmem:[%s2] sm:$0xf]
    %v122 = vld [vmem:[%s2 + $0x4] sm:$0xf]
    %v123 = vld [vmem:[%s2 + $0x8] sm:$0xf]
    %v124 = vld [vmem:[%s2 + $0xc] sm:$0xf]
    %v125 = vld [vmem:[%s3] sm:$0xf]
    %v126 = vld [vmem:[%s3 + $0x4] sm:$0xf]
    %v127 = vld [vmem:[%s3 + $0x8] sm:$0xf]
    %v128 = vld [vmem:[%s3 + $0xc] sm:$0xf]
    %v133 = vunpack.c.l.b16 %v125
    %v134 = vunpack.c.l.b16 %v126
    %v135 = vunpack.c.l.b16 %v127
    %v136 = vunpack.c.l.b16 %v128
    %v137 = vpack.c.b16 %v134, %v133
    %v138 = vpack.c.b16 %v136, %v135
    %vm141 = vcmask 261120
    %v143 = vsel %vm141, %v105, 0
    %v146 = vsel %vm141, %v106, 0
    %v149 = vsel %vm141, %v107, 0
    %v152 = vsel %vm141, %v108, 0
    %v155 = vsel %vm141, %v109, 0
    %v158 = vsel %vm141, %v110, 0
    %v161 = vsel %vm141, %v111, 0
    %v164 = vsel %vm141, %v112, 0
    %v167 = vsel %vm141, %v113, 0
    %v170 = vsel %vm141, %v114, 0
    %v173 = vsel %vm141, %v115, 0
    %v176 = vsel %vm141, %v116, 0
    %v179 = vsel %vm141, %v117, 0
    %v182 = vsel %vm141, %v118, 0
    %v185 = vsel %vm141, %v119, 0
    %v188 = vsel %vm141, %v120, 0
    %190 = vmatprep.subr.bf16.mxu0 0
    %191 = vmatpush1.bf16.msra.mxu0 0
    %192 = vmatprep.subr.bf16.mxu0 0
    %193 = vmatpush1.bf16.msra.mxu0 0
    %194 = vmatprep.subr.bf16.mxu0 0
    %195 = vmatpush1.bf16.msra.mxu0 0
    %196 = vmatprep.subr.bf16.mxu0 0
    %197 = vmatpush1.bf16.msra.mxu0 0
    %198 = vmatprep.subr.bf16.mxu0 0
    %199 = vmatpush1.bf16.msra.mxu0 0
    %200 = vmatprep.subr.bf16.mxu0 0
    %201 = vmatpush1.bf16.msra.mxu0 0
    %202 = vmatprep.subr.bf16.mxu0 0
    %203 = vmatpush1.bf16.msra.mxu0 %v138
    %204 = vmatprep.subr.bf16.mxu0 0
    %205 = vmatpush1.bf16.msra.mxu0 %v137
    %206 = vmatprep.subr.bf16.mxu0 0
    %207 = vmatpush2.bf16.msra.mxu0 0
    %208 = vmatprep.subr.bf16.mxu0 0
    %209 = vmatpush2.bf16.msra.mxu0 0
    %210 = vmatprep.subr.bf16.mxu0 0
    %211 = vmatpush2.bf16.msra.mxu0 0
    %212 = vmatprep.subr.bf16.mxu0 0
    %213 = vmatpush2.bf16.msra.mxu0 0
    %214 = vmatprep.subr.bf16.mxu0 0
    %215 = vmatpush2.bf16.msra.mxu0 0
    %216 = vmatprep.subr.bf16.mxu0 0
    %217 = vmatpush2.bf16.msra.mxu0 0
    %218 = vmatprep.subr.bf16.mxu0 0
    %219 = vmatpush2.bf16.msra.mxu0 0
    %220 = vmatprep.subr.bf16.mxu0 0
    %221 = vmatpush2.bf16.msra.mxu0 0
    %222 = vmatprep.mubr.bf16.mxu0 0
    %223 = vmatmul.mubr.bf16.gmra.mxu0 %v143
    %v224 = vpop.f32.mrf.mxu0
    %v225 = vadd.f32 0.0, %v224
    %v226 = vpop.f32.mrf.mxu0
    %v227 = vpop.f32.mrf.mxu0
    %v228 = vadd.f32 0.0, %v227
    %v229 = vpop.f32.mrf.mxu0
    %230 = vmatprep.mubr.bf16.mxu0 0
    %231 = vmatmul.mubr.bf16.gmra.mxu0 %v146
    %v232 = vpop.f32.mrf.mxu0
    %v233 = vadd.f32 0.0, %v232
    %v234 = vpop.f32.mrf.mxu0
    %v235 = vpop.f32.mrf.mxu0
    %v236 = vadd.f32 0.0, %v235
    %v237 = vpop.f32.mrf.mxu0
    %238 = vmatprep.mubr.bf16.mxu0 0
    %239 = vmatmul.mubr.bf16.gmra.mxu0 %v149
    %v240 = vpop.f32.mrf.mxu0
    %v241 = vadd.f32 0.0, %v240
    %v242 = vpop.f32.mrf.mxu0
    %v243 = vpop.f32.mrf.mxu0
    %v244 = vadd.f32 0.0, %v243
    %v245 = vpop.f32.mrf.mxu0
    %246 = vmatprep.mubr.bf16.mxu0 0
    %247 = vmatmul.mubr.bf16.gmra.mxu0 %v152
    %v248 = vpop.f32.mrf.mxu0
    %v249 = vadd.f32 0.0, %v248
    %v250 = vpop.f32.mrf.mxu0
    %v251 = vpop.f32.mrf.mxu0
    %v252 = vadd.f32 0.0, %v251
    %v253 = vpop.f32.mrf.mxu0
    %254 = vmatprep.mubr.bf16.mxu0 0
    %255 = vmatmul.mubr.bf16.gmra.mxu0 %v155
    %v256 = vpop.f32.mrf.mxu0
    %v257 = vadd.f32 0.0, %v256
    %v258 = vpop.f32.mrf.mxu0
    %v259 = vpop.f32.mrf.mxu0
    %v260 = vadd.f32 0.0, %v259
    %v261 = vpop.f32.mrf.mxu0
    %262 = vmatprep.mubr.bf16.mxu0 0
    %263 = vmatmul.mubr.bf16.gmra.mxu0 %v158
    %v264 = vpop.f32.mrf.mxu0
    %v265 = vadd.f32 0.0, %v264
    %v266 = vpop.f32.mrf.mxu0
    %v267 = vpop.f32.mrf.mxu0
    %v268 = vadd.f32 0.0, %v267
    %v269 = vpop.f32.mrf.mxu0
    %270 = vmatprep.mubr.bf16.mxu0 0
    %271 = vmatmul.mubr.bf16.gmra.mxu0 %v161
    %v272 = vpop.f32.mrf.mxu0
    %v273 = vadd.f32 0.0, %v272
    %v274 = vpop.f32.mrf.mxu0
    %v275 = vpop.f32.mrf.mxu0
    %v276 = vadd.f32 0.0, %v275
    %v277 = vpop.f32.mrf.mxu0
    %278 = vmatprep.mubr.bf16.mxu0 0
    %279 = vmatmul.mubr.bf16.gmra.mxu0 %v164
    %v280 = vpop.f32.mrf.mxu0
    %v281 = vadd.f32 0.0, %v280
    %v282 = vpop.f32.mrf.mxu0
    %v283 = vpop.f32.mrf.mxu0
    %v284 = vadd.f32 0.0, %v283
    %v285 = vpop.f32.mrf.mxu0
    %286 = vmatprep.mubr.bf16.mxu0 0
    %287 = vmatmul.mubr.bf16.gmra.mxu0 %v167
    %v288 = vpop.f32.mrf.mxu0
    %v289 = vadd.f32 0.0, %v288
    %v290 = vpop.f32.mrf.mxu0
    %v291 = vpop.f32.mrf.mxu0
    %v292 = vadd.f32 0.0, %v291
    %v293 = vpop.f32.mrf.mxu0
    %294 = vmatprep.mubr.bf16.mxu0 0
    %295 = vmatmul.mubr.bf16.gmra.mxu0 %v170
    %v296 = vpop.f32.mrf.mxu0
    %v297 = vadd.f32 0.0, %v296
    %v298 = vpop.f32.mrf.mxu0
    %v299 = vpop.f32.mrf.mxu0
    %v300 = vadd.f32 0.0, %v299
    %v301 = vpop.f32.mrf.mxu0
    %302 = vmatprep.mubr.bf16.mxu0 0
    %303 = vmatmul.mubr.bf16.gmra.mxu0 %v173
    %v304 = vpop.f32.mrf.mxu0
    %v305 = vadd.f32 0.0, %v304
    %v306 = vpop.f32.mrf.mxu0
    %v307 = vpop.f32.mrf.mxu0
    %v308 = vadd.f32 0.0, %v307
    %v309 = vpop.f32.mrf.mxu0
    %310 = vmatprep.mubr.bf16.mxu0 0
    %311 = vmatmul.mubr.bf16.gmra.mxu0 %v176
    %v312 = vpop.f32.mrf.mxu0
    %v313 = vadd.f32 0.0, %v312
    %v314 = vpop.f32.mrf.mxu0
    %v315 = vpop.f32.mrf.mxu0
    %v316 = vadd.f32 0.0, %v315
    %v317 = vpop.f32.mrf.mxu0
    %318 = vmatprep.mubr.bf16.mxu0 0
    %319 = vmatmul.mubr.bf16.gmra.mxu0 %v179
    %v320 = vpop.f32.mrf.mxu0
    %v321 = vadd.f32 0.0, %v320
    %v322 = vpop.f32.mrf.mxu0
    %v323 = vpop.f32.mrf.mxu0
    %v324 = vadd.f32 0.0, %v323
    %v325 = vpop.f32.mrf.mxu0
    %326 = vmatprep.mubr.bf16.mxu0 0
    %327 = vmatmul.mubr.bf16.gmra.mxu0 %v182
    %v328 = vpop.f32.mrf.mxu0
    %v329 = vadd.f32 0.0, %v328
    %v330 = vpop.f32.mrf.mxu0
    %v331 = vpop.f32.mrf.mxu0
    %v332 = vadd.f32 0.0, %v331
    %v333 = vpop.f32.mrf.mxu0
    %334 = vmatprep.mubr.bf16.mxu0 0
    %335 = vmatmul.mubr.bf16.gmra.mxu0 %v185
    %v336 = vpop.f32.mrf.mxu0
    %v337 = vadd.f32 0.0, %v336
    %v338 = vpop.f32.mrf.mxu0
    %v339 = vpop.f32.mrf.mxu0
    %v340 = vadd.f32 0.0, %v339
    %v341 = vpop.f32.mrf.mxu0
    %342 = vmatprep.mubr.bf16.mxu0 0
    %343 = vmatmul.mubr.bf16.gmra.mxu0 %v188
    %v344 = vpop.f32.mrf.mxu0
    %v345 = vadd.f32 0.0, %v344
    %v346 = vpop.f32.mrf.mxu0
    %v347 = vpop.f32.mrf.mxu0
    %v348 = vadd.f32 0.0, %v347
    %v349 = vpop.f32.mrf.mxu0
    %350 = vdwg.mxu0
    %v355 = vunpack.c.l.b16 %v121
    %v356 = vunpack.c.l.b16 %v122
    %v357 = vunpack.c.l.b16 %v123
    %v358 = vunpack.c.l.b16 %v124
    %v359 = vpack.c.b16 %v356, %v355
    %v360 = vpack.c.b16 %v358, %v357
    %v364 = vsel %vm141, %v57, 0
    %v367 = vsel %vm141, %v58, 0
    %v370 = vsel %vm141, %v59, 0
    %v373 = vsel %vm141, %v60, 0
    %v376 = vsel %vm141, %v61, 0
    %v379 = vsel %vm141, %v62, 0
    %v382 = vsel %vm141, %v63, 0
    %v385 = vsel %vm141, %v64, 0
    %v388 = vsel %vm141, %v65, 0
    %v391 = vsel %vm141, %v66, 0
    %v394 = vsel %vm141, %v67, 0
    %v397 = vsel %vm141, %v68, 0
    %v400 = vsel %vm141, %v69, 0
    %v403 = vsel %vm141, %v70, 0
    %v406 = vsel %vm141, %v71, 0
    %v409 = vsel %vm141, %v72, 0
    %411 = vmatprep.subr.bf16.mxu0 0
    %412 = vmatpush1.bf16.msra.mxu0 0
    %413 = vmatprep.subr.bf16.mxu0 0
    %414 = vmatpush1.bf16.msra.mxu0 0
    %415 = vmatprep.subr.bf16.mxu0 0
    %416 = vmatpush1.bf16.msra.mxu0 0
    %417 = vmatprep.subr.bf16.mxu0 0
    %418 = vmatpush1.bf16.msra.mxu0 0
    %419 = vmatprep.subr.bf16.mxu0 0
    %420 = vmatpush1.bf16.msra.mxu0 0
    %421 = vmatprep.subr.bf16.mxu0 0
    %422 = vmatpush1.bf16.msra.mxu0 0
    %423 = vmatprep.subr.bf16.mxu0 0
    %424 = vmatpush1.bf16.msra.mxu0 %v360
    %425 = vmatprep.subr.bf16.mxu0 0
    %426 = vmatpush1.bf16.msra.mxu0 %v359
    %427 = vmatprep.subr.bf16.mxu0 0
    %428 = vmatpush2.bf16.msra.mxu0 0
    %429 = vmatprep.subr.bf16.mxu0 0
    %430 = vmatpush2.bf16.msra.mxu0 0
    %431 = vmatprep.subr.bf16.mxu0 0
    %432 = vmatpush2.bf16.msra.mxu0 0
    %433 = vmatprep.subr.bf16.mxu0 0
    %434 = vmatpush2.bf16.msra.mxu0 0
    %435 = vmatprep.subr.bf16.mxu0 0
    %436 = vmatpush2.bf16.msra.mxu0 0
    %437 = vmatprep.subr.bf16.mxu0 0
    %438 = vmatpush2.bf16.msra.mxu0 0
    %439 = vmatprep.subr.bf16.mxu0 0
    %440 = vmatpush2.bf16.msra.mxu0 0
    %441 = vmatprep.subr.bf16.mxu0 0
    %442 = vmatpush2.bf16.msra.mxu0 0
    %443 = vmatprep.mubr.bf16.mxu0 0
    %444 = vmatmul.mubr.bf16.gmra.mxu0 %v364
    %v445 = vpop.f32.mrf.mxu0
    %v446 = vadd.f32 %v225, %v445
    %v447 = vpop.f32.mrf.mxu0
    %v448 = vpop.f32.mrf.mxu0
    %v449 = vadd.f32 %v228, %v448
    %v450 = vpop.f32.mrf.mxu0
    %451 = vmatprep.mubr.bf16.mxu0 0
    %452 = vmatmul.mubr.bf16.gmra.mxu0 %v367
    %v453 = vpop.f32.mrf.mxu0
    %v454 = vadd.f32 %v233, %v453
    %v455 = vpop.f32.mrf.mxu0
    %v456 = vpop.f32.mrf.mxu0
    %v457 = vadd.f32 %v236, %v456
    %v458 = vpop.f32.mrf.mxu0
    %459 = vmatprep.mubr.bf16.mxu0 0
    %460 = vmatmul.mubr.bf16.gmra.mxu0 %v370
    %v461 = vpop.f32.mrf.mxu0
    %v462 = vadd.f32 %v241, %v461
    %v463 = vpop.f32.mrf.mxu0
    %v464 = vpop.f32.mrf.mxu0
    %v465 = vadd.f32 %v244, %v464
    %v466 = vpop.f32.mrf.mxu0
    %467 = vmatprep.mubr.bf16.mxu0 0
    %468 = vmatmul.mubr.bf16.gmra.mxu0 %v373
    %v469 = vpop.f32.mrf.mxu0
    %v470 = vadd.f32 %v249, %v469
    %v471 = vpop.f32.mrf.mxu0
    %v472 = vpop.f32.mrf.mxu0
    %v473 = vadd.f32 %v252, %v472
    %v474 = vpop.f32.mrf.mxu0
    %475 = vmatprep.mubr.bf16.mxu0 0
    %476 = vmatmul.mubr.bf16.gmra.mxu0 %v376
    %v477 = vpop.f32.mrf.mxu0
    %v478 = vadd.f32 %v257, %v477
    %v479 = vpop.f32.mrf.mxu0
    %v480 = vpop.f32.mrf.mxu0
    %v481 = vadd.f32 %v260, %v480
    %v482 = vpop.f32.mrf.mxu0
    %483 = vmatprep.mubr.bf16.mxu0 0
    %484 = vmatmul.mubr.bf16.gmra.mxu0 %v379
    %v485 = vpop.f32.mrf.mxu0
    %v486 = vadd.f32 %v265, %v485
    %v487 = vpop.f32.mrf.mxu0
    %v488 = vpop.f32.mrf.mxu0
    %v489 = vadd.f32 %v268, %v488
    %v490 = vpop.f32.mrf.mxu0
    %491 = vmatprep.mubr.bf16.mxu0 0
    %492 = vmatmul.mubr.bf16.gmra.mxu0 %v382
    %v493 = vpop.f32.mrf.mxu0
    %v494 = vadd.f32 %v273, %v493
    %v495 = vpop.f32.mrf.mxu0
    %v496 = vpop.f32.mrf.mxu0
    %v497 = vadd.f32 %v276, %v496
    %v498 = vpop.f32.mrf.mxu0
    %499 = vmatprep.mubr.bf16.mxu0 0
    %500 = vmatmul.mubr.bf16.gmra.mxu0 %v385
    %v501 = vpop.f32.mrf.mxu0
    %v502 = vadd.f32 %v281, %v501
    %v503 = vpop.f32.mrf.mxu0
    %v504 = vpop.f32.mrf.mxu0
    %v505 = vadd.f32 %v284, %v504
    %v506 = vpop.f32.mrf.mxu0
    %507 = vmatprep.mubr.bf16.mxu0 0
    %508 = vmatmul.mubr.bf16.gmra.mxu0 %v388
    %v509 = vpop.f32.mrf.mxu0
    %v510 = vadd.f32 %v289, %v509
    %v511 = vpop.f32.mrf.mxu0
    %v512 = vpop.f32.mrf.mxu0
    %v513 = vadd.f32 %v292, %v512
    %v514 = vpop.f32.mrf.mxu0
    %515 = vmatprep.mubr.bf16.mxu0 0
    %516 = vmatmul.mubr.bf16.gmra.mxu0 %v391
    %v517 = vpop.f32.mrf.mxu0
    %v518 = vadd.f32 %v297, %v517
    %v519 = vpop.f32.mrf.mxu0
    %v520 = vpop.f32.mrf.mxu0
    %v521 = vadd.f32 %v300, %v520
    %v522 = vpop.f32.mrf.mxu0
    %523 = vmatprep.mubr.bf16.mxu0 0
    %524 = vmatmul.mubr.bf16.gmra.mxu0 %v394
    %v525 = vpop.f32.mrf.mxu0
    %v526 = vadd.f32 %v305, %v525
    %v527 = vpop.f32.mrf.mxu0
    %v528 = vpop.f32.mrf.mxu0
    %v529 = vadd.f32 %v308, %v528
    %v530 = vpop.f32.mrf.mxu0
    %531 = vmatprep.mubr.bf16.mxu0 0
    %532 = vmatmul.mubr.bf16.gmra.mxu0 %v397
    %v533 = vpop.f32.mrf.mxu0
    %v534 = vadd.f32 %v313, %v533
    %v535 = vpop.f32.mrf.mxu0
    %v536 = vpop.f32.mrf.mxu0
    %v537 = vadd.f32 %v316, %v536
    %v538 = vpop.f32.mrf.mxu0
    %539 = vmatprep.mubr.bf16.mxu0 0
    %540 = vmatmul.mubr.bf16.gmra.mxu0 %v400
    %v541 = vpop.f32.mrf.mxu0
    %v542 = vadd.f32 %v321, %v541
    %v543 = vpop.f32.mrf.mxu0
    %v544 = vpop.f32.mrf.mxu0
    %v545 = vadd.f32 %v324, %v544
    %v546 = vpop.f32.mrf.mxu0
    %547 = vmatprep.mubr.bf16.mxu0 0
    %548 = vmatmul.mubr.bf16.gmra.mxu0 %v403
    %v549 = vpop.f32.mrf.mxu0
    %v550 = vadd.f32 %v329, %v549
    %v551 = vpop.f32.mrf.mxu0
    %v552 = vpop.f32.mrf.mxu0
    %v553 = vadd.f32 %v332, %v552
    %v554 = vpop.f32.mrf.mxu0
    %555 = vmatprep.mubr.bf16.mxu0 0
    %556 = vmatmul.mubr.bf16.gmra.mxu0 %v406
    %v557 = vpop.f32.mrf.mxu0
    %v558 = vadd.f32 %v337, %v557
    %v559 = vpop.f32.mrf.mxu0
    %v560 = vpop.f32.mrf.mxu0
    %v561 = vadd.f32 %v340, %v560
    %v562 = vpop.f32.mrf.mxu0
    %563 = vmatprep.mubr.bf16.mxu0 0
    %564 = vmatmul.mubr.bf16.gmra.mxu0 %v409
    %v565 = vpop.f32.mrf.mxu0
    %v566 = vadd.f32 %v345, %v565
    %v567 = vpop.f32.mrf.mxu0
    %v568 = vpop.f32.mrf.mxu0
    %v569 = vadd.f32 %v348, %v568
    %v570 = vpop.f32.mrf.mxu0
    %571 = vdwg.mxu0
    %v572 = vld [vmem:[%s4] sm:$0x1]
    %v574 = vlaneseq
    %v575 = vshrl.u32 %v574, 7
    %v576 = vsub.s32 0, %v575
    %v577 = vrot.slane %v572, %v576
    %v579 = vadd.f32 %v446, %v577
    %v580 = vadd.f32 %v449, %v577
    %v581 = vadd.f32 %v454, %v577
    %v582 = vadd.f32 %v457, %v577
    %v583 = vadd.f32 %v462, %v577
    %v584 = vadd.f32 %v465, %v577
    %v585 = vadd.f32 %v470, %v577
    %v586 = vadd.f32 %v473, %v577
    %v587 = vadd.f32 %v478, %v577
    %v588 = vadd.f32 %v481, %v577
    %v589 = vadd.f32 %v486, %v577
    %v590 = vadd.f32 %v489, %v577
    %v591 = vadd.f32 %v494, %v577
    %v592 = vadd.f32 %v497, %v577
    %v593 = vadd.f32 %v502, %v577
    %v594 = vadd.f32 %v505, %v577
    %v595 = vadd.f32 %v510, %v577
    %v596 = vadd.f32 %v513, %v577
    %v597 = vadd.f32 %v518, %v577
    %v598 = vadd.f32 %v521, %v577
    %v599 = vadd.f32 %v526, %v577
    %v600 = vadd.f32 %v529, %v577
    %v601 = vadd.f32 %v534, %v577
    %v602 = vadd.f32 %v537, %v577
    %v603 = vadd.f32 %v542, %v577
    %v604 = vadd.f32 %v545, %v577
    %v605 = vadd.f32 %v550, %v577
    %v606 = vadd.f32 %v553, %v577
    %v607 = vadd.f32 %v558, %v577
    %v608 = vadd.f32 %v561, %v577
    %v609 = vadd.f32 %v566, %v577
    %v610 = vadd.f32 %v569, %v577
    %v611 = vpack.c.bf16 %v580, %v579
    %v612 = vpack.c.bf16 %v582, %v581
    %v613 = vpack.c.bf16 %v584, %v583
    %v614 = vpack.c.bf16 %v586, %v585
    %v615 = vpack.c.bf16 %v588, %v587
    %v616 = vpack.c.bf16 %v590, %v589
    %v617 = vpack.c.bf16 %v592, %v591
    %v618 = vpack.c.bf16 %v594, %v593
    %v619 = vpack.c.bf16 %v596, %v595
    %v620 = vpack.c.bf16 %v598, %v597
    %v621 = vpack.c.bf16 %v600, %v599
    %v622 = vpack.c.bf16 %v602, %v601
    %v623 = vpack.c.bf16 %v604, %v603
    %v624 = vpack.c.bf16 %v606, %v605
    %v625 = vpack.c.bf16 %v608, %v607
    %v626 = vpack.c.bf16 %v610, %v609
    %v627 = vtanh.bf16.pop %v611
    %v628 = vtanh.bf16.pop %v612
    %v629 = vtanh.bf16.pop %v613
    %v630 = vtanh.bf16.pop %v614
    %v631 = vtanh.bf16.pop %v615
    %v632 = vtanh.bf16.pop %v616
    %v633 = vtanh.bf16.pop %v617
    %v634 = vtanh.bf16.pop %v618
    %v635 = vtanh.bf16.pop %v619
    %v636 = vtanh.bf16.pop %v620
    %v637 = vtanh.bf16.pop %v621
    %v638 = vtanh.bf16.pop %v622
    %v639 = vtanh.bf16.pop %v623
    %v640 = vtanh.bf16.pop %v624
    %v641 = vtanh.bf16.pop %v625
    %v642 = vtanh.bf16.pop %v626
    %v643 = vld [vmem:[%s5] sm:$0x1]
    %644 = vmatprep.subr.bf16.mxu0 0
    %645 = vmatpush1.bf16.xpose.msra.mxu0 %v634
    %646 = vmatprep.subr.bf16.mxu0 0
    %647 = vmatpush1.bf16.xpose.msra.mxu0 %v633
    %648 = vmatprep.subr.bf16.mxu0 0
    %649 = vmatpush1.bf16.xpose.msra.mxu0 %v632
    %650 = vmatprep.subr.bf16.mxu0 0
    %651 = vmatpush1.bf16.xpose.msra.mxu0 %v631
    %652 = vmatprep.subr.bf16.mxu0 0
    %653 = vmatpush1.bf16.xpose.msra.mxu0 %v630
    %654 = vmatprep.subr.bf16.mxu0 0
    %655 = vmatpush1.bf16.xpose.msra.mxu0 %v629
    %656 = vmatprep.subr.bf16.mxu0 0
    %657 = vmatpush1.bf16.xpose.msra.mxu0 %v628
    %658 = vmatprep.subr.bf16.mxu0 0
    %659 = vmatpush1.bf16.xpose.msra.mxu0 %v627
    %660 = vmatprep.subr.bf16.mxu0 0
    %661 = vmatpush2.bf16.xpose.msra.mxu0 %v642
    %662 = vmatprep.subr.bf16.mxu0 0
    %663 = vmatpush2.bf16.xpose.msra.mxu0 %v641
    %664 = vmatprep.subr.bf16.mxu0 0
    %665 = vmatpush2.bf16.xpose.msra.mxu0 %v640
    %666 = vmatprep.subr.bf16.mxu0 0
    %667 = vmatpush2.bf16.xpose.msra.mxu0 %v639
    %668 = vmatprep.subr.bf16.mxu0 0
    %669 = vmatpush2.bf16.xpose.msra.mxu0 %v638
    %670 = vmatprep.subr.bf16.mxu0 0
    %671 = vmatpush2.bf16.xpose.msra.mxu0 %v637
    %672 = vmatprep.subr.bf16.mxu0 0
    %673 = vmatpush2.bf16.xpose.msra.mxu0 %v636
    %674 = vmatprep.subr.bf16.mxu0 0
    %675 = vmatpush2.bf16.xpose.msra.mxu0 %v635
    %676 = vmatprep.mubr.bf16.mxu0 0
    %677 = vmatmul.mubr.bf16.gmra.mxu0 %v643
    %v678 = vpop.f32.mrf.mxu0
    %v679 = vadd.f32 0.0, %v678
    %v680 = vpop.f32.mrf.mxu0
    %v681 = vadd.f32 0.0, %v680
    %v682 = vpop.f32.mrf.mxu0
    %v683 = vpop.f32.mrf.mxu0
    %684 = vdwg.mxu0
    %v687 = vcombine.low %v679, %v681
    %v689 = vunpack.c.l.s4 1983009808
    %v690 = vunpack.c.0.s8 %v689
    %v691 = vlaneseq
    %v692 = vshrl.u32 %v691, 7
    %v693 = vsub.s32 %v690, %v692
    %v694 = vrot.slane %v687, %v693
    %696 = vst [vmem:[#allocation2] sm:$0xf] %v694
    // Predicated region
    $region26: #{tpu_custom_call.1} parent=1 // pred_check
      _
    $region27: #{tpu_custom_call.1} parent=1 // pred_check_branch
      %698 = sbr.rel (0) target = $region29
    $region28: #{tpu_custom_call.1} parent=1 // pred_region
      %s700 = ssub.s32 64, 64
      %701 = vsyncadd [#allocation3], %s700
      %s703 = sshll.u32 [#allocation2], 4
      %s704 = int_to_ptr.vmem [resolvable:$true] %s703
      %706 = dma.vmem_to_hbm [thread:$0]  %s704, 64, %s6, [#allocation3]
    $region29: #{tpu_custom_call.1} parent=1 // pred_fallthru
      _
    // Predicated region
    $region30: #{tpu_custom_call.1} parent=1 // pred_check
      _
    $region31: #{tpu_custom_call.1} parent=1 // pred_check_branch
      %708 = sbr.rel (0) target = $region33
    $region32: #{tpu_custom_call.1} parent=1 // pred_region
      %709 = dma.done [#allocation3], 64
    $region33: #{tpu_custom_call.1} parent=1 // pred_fallthru
      _
    %710 = vsyncpa [#allocation3], 1

</llo_original>
